<compile_context>
chip_gen: v5e
topology: v5e:2x2
jax: 0.10.0
libtpu: 0.0.40
codegen_flags: <defaults>
</compile_context>

<pallas_src>
import functools

import jax
import jax.numpy as jnp
from jax.experimental import pallas as pl
from jax.experimental.pallas import tpu as pltpu


def _focal_loss_kernel(logits_ref, target_ref, out_ref, acc_ref, *,
                       alpha, gamma, epsilon, batch_size):
    i = pl.program_id(0)

    @pl.when(i == 0)
    def _():
        acc_ref[...] = jnp.zeros_like(acc_ref)

    logits = logits_ref[...].astype(jnp.float32)      # (TB, C)
    tgt = target_ref[...]                             # (TB, 1) int32
    TB, C = logits.shape

    # logsumexp per row — the only full-plane transcendental (one exp / elem).
    m = jnp.max(logits, axis=-1, keepdims=True)       # (TB, 1)
    e = jnp.exp(logits - m)                           # (TB, C)
    denom = jnp.sum(e, axis=-1, keepdims=True)        # (TB, 1)
    lse = m + jnp.log(denom)                          # (TB, 1)

    # Gather the target-class logit via compare + select (no one-hot f32 mul).
    class_idx = jax.lax.broadcasted_iota(jnp.int32, (TB, C), 1)
    match = class_idx == tgt                          # (TB, C) bool
    logit_t = jnp.sum(jnp.where(match, logits, 0.0), axis=-1, keepdims=True)

    # Rows with invalid / padded targets (e.g. -1 padding) contribute 0,
    # matching the all-zero one-hot row of the torch reference.
    valid = jnp.logical_and(tgt >= 0, tgt < C)        # (TB, 1) bool

    # Per-row focal loss, all O(B) work from here on.
    logp_t = logit_t - lse                            # log softmax at target
    p_t = jnp.exp(logp_t)                             # softmax prob at target
    focal_w = jnp.exp(gamma * jnp.log(jnp.maximum(1.0 - p_t, 1e-30)))
    loss_row = -alpha * focal_w * jnp.log(p_t + epsilon)   # == torch (p+eps).log()
    loss_row = jnp.where(valid, loss_row, 0.0)        # (TB, 1)

    acc_ref[...] += jnp.sum(loss_row, axis=(0, 1), keepdims=True)

    @pl.when(i == pl.num_programs(0) - 1)
    def _():
        out_ref[...] = acc_ref[...] * jnp.float32(1.0 / float(batch_size))


def _round_up(x, m):
    return ((x + m - 1) // m) * m


def focal_loss(logits, target, *, num_cls, gamma=2.0, alpha=0.25, epsilon=1e-9):
    """Softmax focal loss; returns a scalar (mean over batch)."""
    B, C = logits.shape
    assert C == num_cls

    # Batch tile: multiple of 8 sublanes, capped so a single f32 tile stays
    # around ~4 MiB (double-buffered inputs then fit comfortably inside the
    # scoped-VMEM defaults of v5e (16 MiB) / v6e (32 MiB) / v7x (32 of 64 MiB)).
    bytes_per_row = max(C * 4, 1)
    max_rows = max(8, (4 * 1024 * 1024) // bytes_per_row)
    TB = min(_round_up(B, 8), _round_up(max_rows, 8), 1024)
    TB = max(8, (TB // 8) * 8)
    B_pad = _round_up(B, TB)

    target2d = target.reshape(B, 1).astype(jnp.int32)
    logits_p = logits
    if B_pad != B:
        logits_p = jnp.pad(logits, ((0, B_pad - B), (0, 0)))
        # Padded rows get target -1 so the kernel masks them out.
        target2d = jnp.pad(target2d, ((0, B_pad - B), (0, 0)), constant_values=-1)

    kernel = functools.partial(
        _focal_loss_kernel,
        alpha=float(alpha), gamma=float(gamma), epsilon=float(epsilon),
        batch_size=B,
    )
    out = pl.pallas_call(
        kernel,
        out_shape=jax.ShapeDtypeStruct((1, 1), jnp.float32),
        grid_spec=pltpu.PrefetchScalarGridSpec(
            num_scalar_prefetch=0,
            grid=(B_pad // TB,),
            in_specs=[
                pl.BlockSpec((TB, C), lambda i: (i, 0)),
                pl.BlockSpec((TB, 1), lambda i: (i, 0)),
            ],
            out_specs=pl.BlockSpec((1, 1), lambda i: (0, 0)),
            scratch_shapes=[pltpu.VMEM((1, 1), jnp.float32)],
        ),
        compiler_params=pltpu.CompilerParams(
            # Accumulator carried across the batch axis -> reduction axis.
            dimension_semantics=("arbitrary",),
        ),
    )(logits_p, target2d)
    return out[0, 0]


def _focal_loss_reference(logits, target, *, num_cls, gamma, alpha, epsilon):
    """Pure-JAX transcription of the torch SOFTMAX branch (for verification)."""
    one_hot = jax.nn.one_hot(target, num_cls, dtype=jnp.float32)
    p = jax.nn.softmax(logits.astype(jnp.float32), axis=-1)
    loss = -alpha * one_hot * jnp.power(1.0 - p, gamma) * jnp.log(p + epsilon)
    return jnp.mean(jnp.sum(loss, axis=1))


if __name__ == "__main__":
    # Module config (synthetic, deterministic): label_size = 32 classes.
    NUM_CLS = 32
    BATCH = 8

    key = jax.random.PRNGKey(0)
    k_logits, k_target = jax.random.split(key)
    logits = jax.random.normal(k_logits, (BATCH, NUM_CLS), dtype=jnp.float32)
    target = jax.random.randint(k_target, (BATCH,), 0, NUM_CLS, dtype=jnp.int32)

    loss = focal_loss(logits, target, num_cls=NUM_CLS,
                      gamma=2.0, alpha=0.25, epsilon=1e-9)
    loss = jax.block_until_ready(loss)

    ref = _focal_loss_reference(logits, target, num_cls=NUM_CLS,
                                gamma=2.0, alpha=0.25, epsilon=1e-9)
    assert jnp.abs(loss - ref) < 1e-4, (loss, ref)

    print("KERNEL_OK")
</pallas_src>

<mosaic_0001>
module attributes {stable_mosaic.version = 11 : i64} {
  func.func @_focal_loss_kernel(%arg0: i32, %arg1: memref<8x32xf32, #tpu.memory_space<vmem>>, %arg2: memref<8x1xi32, #tpu.memory_space<vmem>>, %arg3: memref<1x1xf32, #tpu.memory_space<vmem>>, %arg4: memref<1x1xf32, #tpu.memory_space<vmem>>) attributes {dimension_semantics = [#tpu.dimension_semantics<arbitrary>], iteration_bounds = array<i64: 1>, scalar_prefetch = 0 : i64, scratch_operands = 1 : i64, tpu.core_type = #tpu.core_type<tc>, window_params = [{transform_indices = @transform_0, window_bounds = array<i64: 8, 32>}, {transform_indices = @transform_1, window_bounds = array<i64: 8, 1>}, {pipeline_mode = #tpu.pipeline_mode<synchronous>, transform_indices = @transform_2, window_bounds = array<i64: 1, 1>}]} {
    %c0_i32 = arith.constant 0 : i32
    %0 = arith.cmpi eq, %arg0, %c0_i32 : i32
    %1 = arith.extui %0 : i1 to i32
    %c0_i32_0 = arith.constant 0 : i32
    %2 = arith.cmpi ne, %1, %c0_i32_0 : i32
    scf.if %2 {
      %cst_21 = arith.constant 0.000000e+00 : f32
      %55 = vector.broadcast %cst_21 : f32 to vector<1x1xf32>
      %c0_22 = arith.constant 0 : index
      %c0_23 = arith.constant 0 : index
      %56 = vector.load %arg4[%c0_22, %c0_23] : memref<1x1xf32, #tpu.memory_space<vmem>>, vector<1x1xf32>
      tpu.vector_store %arg4[%c0_22, %c0_23], %55 {strides = array<i32>} : memref<1x1xf32, #tpu.memory_space<vmem>>, vector<1x1xf32>,
    } else {
    }
    %c0 = arith.constant 0 : index
    %c0_1 = arith.constant 0 : index
    %3 = vector.load %arg1[%c0, %c0_1] : memref<8x32xf32, #tpu.memory_space<vmem>>, vector<8x32xf32>
    %c0_2 = arith.constant 0 : index
    %c0_3 = arith.constant 0 : index
    %4 = vector.load %arg2[%c0_2, %c0_3] : memref<8x1xi32, #tpu.memory_space<vmem>>, vector<8x1xi32>
    %cst = arith.constant dense<0xFF800000> : vector<8xf32>
    %5 = vector.multi_reduction <maximumf>, %3, %cst [1] : vector<8x32xf32> to vector<8xf32>
    %6 = vector.shape_cast %5 : vector<8xf32> to vector<8x1xf32>
    %7 = vector.broadcast %6 : vector<8x1xf32> to vector<8x32xf32>
    %8 = arith.subf %3, %7 : vector<8x32xf32>
    %9 = math.exp %8 : vector<8x32xf32>
    %cst_4 = arith.constant dense<0.000000e+00> : vector<8xf32>
    %10 = vector.multi_reduction <add>, %9, %cst_4 [1] : vector<8x32xf32> to vector<8xf32>
    %11 = vector.shape_cast %10 : vector<8xf32> to vector<8x1xf32>
    %12 = math.log %11 : vector<8x1xf32>
    %13 = arith.addf %6, %12 : vector<8x1xf32>
    %14 = tpu.iota {dimensions = array<i32: 1>} : vector<8x32xi32>
    %15 = vector.broadcast %4 : vector<8x1xi32> to vector<8x32xi32>
    %16 = arith.cmpi eq, %14, %15 : vector<8x32xi32>
    %cst_5 = arith.constant 0.000000e+00 : f32
    %17 = vector.broadcast %cst_5 : f32 to vector<8x32xf32>
    %18 = arith.select %16, %3, %17 : vector<8x32xi1>, vector<8x32xf32>
    %cst_6 = arith.constant dense<0.000000e+00> : vector<8xf32>
    %19 = vector.multi_reduction <add>, %18, %cst_6 [1] : vector<8x32xf32> to vector<8xf32>
    %20 = vector.shape_cast %19 : vector<8xf32> to vector<8x1xf32>
    %c0_i32_7 = arith.constant 0 : i32
    %21 = vector.broadcast %c0_i32_7 : i32 to vector<8x1xi32>
    %22 = arith.cmpi sge, %4, %21 : vector<8x1xi32>
    %c32_i32 = arith.constant 32 : i32
    %23 = vector.broadcast %c32_i32 : i32 to vector<8x1xi32>
    %24 = arith.cmpi slt, %4, %23 : vector<8x1xi32>
    %25 = arith.andi %22, %24 : vector<8x1xi1>
    %26 = arith.subf %20, %13 : vector<8x1xf32>
    %27 = math.exp %26 : vector<8x1xf32>
    %cst_8 = arith.constant 1.000000e+00 : f32
    %28 = vector.broadcast %cst_8 : f32 to vector<8x1xf32>
    %29 = arith.subf %28, %27 : vector<8x1xf32>
    %cst_9 = arith.constant 1.000000e-30 : f32
    %30 = vector.broadcast %cst_9 : f32 to vector<8x1xf32>
    %31 = arith.maximumf %29, %30 : vector<8x1xf32>
    %32 = math.log %31 : vector<8x1xf32>
    %cst_10 = arith.constant 2.000000e+00 : f32
    %33 = vector.broadcast %cst_10 : f32 to vector<8x1xf32>
    %34 = arith.mulf %33, %32 : vector<8x1xf32>
    %35 = math.exp %34 : vector<8x1xf32>
    %cst_11 = arith.constant -2.500000e-01 : f32
    %36 = vector.broadcast %cst_11 : f32 to vector<8x1xf32>
    %37 = arith.mulf %36, %35 : vector<8x1xf32>
    %cst_12 = arith.constant 9.99999971E-10 : f32
    %38 = vector.broadcast %cst_12 : f32 to vector<8x1xf32>
    %39 = arith.addf %27, %38 : vector<8x1xf32>
    %40 = math.log %39 : vector<8x1xf32>
    %41 = arith.mulf %37, %40 : vector<8x1xf32>
    %cst_13 = arith.constant 0.000000e+00 : f32
    %42 = vector.broadcast %cst_13 : f32 to vector<8x1xf32>
    %43 = arith.select %25, %41, %42 : vector<8x1xi1>, vector<8x1xf32>
    %c0_14 = arith.constant 0 : index
    %c0_15 = arith.constant 0 : index
    %44 = vector.load %arg4[%c0_14, %c0_15] : memref<1x1xf32, #tpu.memory_space<vmem>>, vector<1x1xf32>
    %45 = vector.shape_cast %43 : vector<8x1xf32> to vector<1x8x1xf32>
    %cst_16 = arith.constant dense<0.000000e+00> : vector<1xf32>
    %46 = vector.multi_reduction <add>, %45, %cst_16 [1, 2] : vector<1x8x1xf32> to vector<1xf32>
    %47 = vector.shape_cast %46 : vector<1xf32> to vector<1x1x1xf32>
    %48 = vector.extract %47[0, 0, 0] : f32 from vector<1x1x1xf32>
    %49 = vector.broadcast %48 : f32 to vector<1x1xf32>
    %50 = arith.addf %44, %49 : vector<1x1xf32>
    %c0_17 = arith.constant 0 : index
    %c0_18 = arith.constant 0 : index
    %51 = vector.load %arg4[%c0_17, %c0_18] : memref<1x1xf32, #tpu.memory_space<vmem>>, vector<1x1xf32>
    tpu.vector_store %arg4[%c0_17, %c0_18], %50 {strides = array<i32>} : memref<1x1xf32, #tpu.memory_space<vmem>>, vector<1x1xf32>,
    %c0_i32_19 = arith.constant 0 : i32
    %52 = arith.cmpi eq, %arg0, %c0_i32_19 : i32
    %53 = arith.extui %52 : i1 to i32
    %c0_i32_20 = arith.constant 0 : i32
    %54 = arith.cmpi ne, %53, %c0_i32_20 : i32
    scf.if %54 {
      %c0_21 = arith.constant 0 : index
      %c0_22 = arith.constant 0 : index
      %55 = vector.load %arg4[%c0_21, %c0_22] : memref<1x1xf32, #tpu.memory_space<vmem>>, vector<1x1xf32>
      %cst_23 = arith.constant 1.250000e-01 : f32
      %56 = vector.broadcast %cst_23 : f32 to vector<1x1xf32>
      %57 = arith.mulf %55, %56 : vector<1x1xf32>
      %c0_24 = arith.constant 0 : index
      %c0_25 = arith.constant 0 : index
      %58 = vector.load %arg3[%c0_24, %c0_25] : memref<1x1xf32, #tpu.memory_space<vmem>>, vector<1x1xf32>
      tpu.vector_store %arg3[%c0_24, %c0_25], %57 {strides = array<i32>} : memref<1x1xf32, #tpu.memory_space<vmem>>, vector<1x1xf32>,
    } else {
    }
    return
  }
  func.func @transform_0(%arg0: i32) -> (i32, i32) {
    %c0_i32 = arith.constant 0 : i32
    %c0_i32_0 = arith.constant 0 : i32
    return %arg0, %c0_i32 : i32, i32
  }
  func.func @transform_1(%arg0: i32) -> (i32, i32) {
    %c0_i32 = arith.constant 0 : i32
    %c0_i32_0 = arith.constant 0 : i32
    return %arg0, %c0_i32 : i32, i32
  }
  func.func @transform_2(%arg0: i32) -> (i32, i32) {
    %c0_i32 = arith.constant 0 : i32
    %c0_i32_0 = arith.constant 0 : i32
    %c0_i32_1 = arith.constant 0 : i32
    return %c0_i32, %c0_i32_0 : i32, i32
  }
}

</mosaic_0001>

<llo_original>
// kernel: tpu_custom_call.1
$region0: #{tpu_custom_call.1}
  #allocation0 [shape = 'u32[]', space=smem, size = 0x4, offset = 0x4, fixed_abs, tag = 'smem constant byte address 0x4 - core index']
  #allocation1 [shape = 'u32[72,128]{1,0:T(1,128)}', space=vmem, size = 0x9000, scoped, tag = 'internal scratch']
  #allocation2 [shape = 'f32[1,1]{1,0:T(1,128)}', space=vmem, size = 0x200, scoped, tag = 'scratch operand']
  %s0 = inlined_call_operand.vmem [shape: f32[8,32], index: 0, kind: input, shape index: {}]
  %s1 = inlined_call_operand.vmem [shape: s32[8,1], index: 1, kind: input, shape index: {}]
  %s2 = inlined_call_operand.hbm [shape: f32[1,1], index: 2, kind: output, shape index: {}]
  %s3 = sld [smem:[#allocation0]]
  $region26: #{tpu_custom_call.1} parent=0
    _
  %s5 = ssub.s32 1, %s3
  %s6 = scalar_select 0, %s5, %s3
  $region1: #{tpu_custom_call.1} parent=0
    #allocation3 [shape = 'u8[512]{0}', space=vmem, size = 0x400, scoped, tag = 'output window, operand 0, single buffered']
    #allocation4 [shape = 's32[1]{0}', space=sflag, size = 0x4, scoped, tag = 'scoped memory for tpu_custom_call.1']
    %7 = vsyncpa [#allocation4], 0
    // Predicated region
    $region2: #{tpu_custom_call.1} parent=1 // pred_check
      _
    $region3: #{tpu_custom_call.1} parent=1 // pred_check_branch
      %9 = sbr.rel (0) target = $region5
    $region4: #{tpu_custom_call.1} parent=1 // pred_region
      _
    $region5: #{tpu_custom_call.1} parent=1 // pred_fallthru
      _
    // Predicated region
    $region6: #{tpu_custom_call.1} parent=1 // pred_check
      _
    $region7: #{tpu_custom_call.1} parent=1 // pred_check_branch
      %11 = sbr.rel (0) target = $region9
    $region8: #{tpu_custom_call.1} parent=1 // pred_region
      _
    $region9: #{tpu_custom_call.1} parent=1 // pred_fallthru
      _
    %p12 = scmp.eq.s32.totalorder 0, 0
    // Predicated region
    $region10: #{tpu_custom_call.1} parent=1 // pred_check
      %p13 = pneg %p12
    $region11: #{tpu_custom_call.1} parent=1 // pred_check_branch
      %15 = sbr.rel (%p13) target = $region13
    $region12: #{tpu_custom_call.1} parent=1 // pred_region
      %vm16 = vcmask 0
      %17 = vst.msk [vmem:[#allocation2] sm:$0x1] %vm16, 0.0
    $region13: #{tpu_custom_call.1} parent=1 // pred_fallthru
      _
    %v18 = vld [vmem:[%s0] sm:$0xff]
    %v19 = vld [vmem:[%s1] sm:$0xff]
    %vm20 = vcmask 261120
    %v21 = vsel %vm20, %v18, -inf
    %22 = vmax.xlane.f32.xlu0 %v21
    %v23 = vpop.xlane.xlu0 %22
    %v24 = vsub.f32 %v18, %v23
    %v25 = vmul.f32 %v24, 1.442695
    %v26 = vpow.pop %v25
    %v27 = vsel %vm20, %v26, 0.0
    %28 = vadd.xlane.f32.xlu0 %v27
    %v29 = vpop.xlane.xlu0 %28
    %v30 = vlog2.pop %v29
    %v31 = vmul.f32 %v30, 0.6931472
    %v32 = vadd.f32 %v23, %v31
    %v33 = vlaneseq
    %v34 = vand.u32 %v33, 127
    %35 = vset.pattern.permute.xlu0 0
    %36 = vperm.xlu0 %35, %v19
    %v37 = vpop.permute.xlu0 %36
    %vm38 = vcmp.eq.s32.totalorder %v34, %v37
    %v39 = vsel %vm38, %v18, 0.0
    %v40 = vsel %vm20, %v39, 0.0
    %41 = vadd.xlane.f32.xlu0 %v40
    %v42 = vpop.xlane.xlu0 %41
    %vm43 = vcmp.ge.s32.totalorder %v19, 0
    %vm44 = vcmp.lt.s32.totalorder %v19, 32
    %vm45 = vmand %vm43, %vm44
    %v46 = vsub.f32 %v42, %v32
    %v47 = vmul.f32 %v46, 1.442695
    %v48 = vpow.pop %v47
    %v49 = vsub.f32 1.0, %v48
    %v50 = vmax.f32 %v49, 1e-30
    %v51 = vlog2.pop %v50
    %v52 = vmul.f32 %v51, 0.6931472
    %v53 = vmul.f32 %v52, 2.0
    %v54 = vmul.f32 %v53, 1.442695
    %v55 = vpow.pop %v54
    %v56 = vmul.f32 %v55, -0.25
    %v57 = vadd.f32 %v48, 1e-09
    %v58 = vlog2.pop %v57
    %v59 = vmul.f32 %v58, 0.6931472
    %v60 = vmul.f32 %v56, %v59
    %v61 = vsel %vm45, %v60, 0.0
    %v62 = vld [vmem:[#allocation2] sm:$0x1]
    %vm63 = vcmask 7168
    %v64 = vsel %vm63, %v61, 0.0
    %65 = vadd.xlane.f32.xlu0 %v64
    %v66 = vpop.xlane.xlu0 %65
    %v67 = vrot.slane %v66, 4
    %v68 = vadd.f32 %v66, %v67
    %v69 = vrot.slane %v68, 2
    %v70 = vadd.f32 %v68, %v69
    %v71 = vrot.slane %v70, 1
    %v72 = vadd.f32 %v70, %v71
    %s73 = vtos %v72
    %v74 = vstv %s73
    %v75 = vadd.f32 %v62, %v74
    %vm76 = vcmask 0
    %77 = vst.msk [vmem:[#allocation2] sm:$0x1] %vm76, %v75
    // Predicated region
    $region14: #{tpu_custom_call.1} parent=1 // pred_check
      %p78 = pneg %p12
    $region15: #{tpu_custom_call.1} parent=1 // pred_check_branch
      %80 = sbr.rel (%p78) target = $region17
    $region16: #{tpu_custom_call.1} parent=1 // pred_region
      %v81 = vld [vmem:[#allocation2] sm:$0x1]
      %v82 = vmul.f32 %v81, 0.125
      %83 = vst.msk [vmem:[#allocation3] sm:$0x1] %vm76, %v82
    $region17: #{tpu_custom_call.1} parent=1 // pred_fallthru
      _
    // Predicated region
    $region18: #{tpu_custom_call.1} parent=1 // pred_check
      _
    $region19: #{tpu_custom_call.1} parent=1 // pred_check_branch
      %85 = sbr.rel (0) target = $region21
    $region20: #{tpu_custom_call.1} parent=1 // pred_region
      %87 = vsyncadd [#allocation4], 0
      %s89 = sshll.u32 [#allocation3], 4
      %s90 = int_to_ptr.vmem [resolvable:$true] %s89
      %s91 = sshll.u32 %s2, 4
      %s92 = int_to_ptr.hbm [resolvable:$true] %s91
      %94 = dma.vmem_to_hbm [thread:$0]  %s90, 16, %s92, [#allocation4]
    $region21: #{tpu_custom_call.1} parent=1 // pred_fallthru
      _
    // Predicated region
    $region22: #{tpu_custom_call.1} parent=1 // pred_check
      _
    $region23: #{tpu_custom_call.1} parent=1 // pred_check_branch
      %96 = sbr.rel (0) target = $region25
    $region24: #{tpu_custom_call.1} parent=1 // pred_region
      %98 = dma.done [#allocation4], 16
    $region25: #{tpu_custom_call.1} parent=1 // pred_fallthru
      _
    %99 = vsyncpa [#allocation4], 1

</llo_original>
